<compile_context>
chip_gen: v5e
topology: v5e:2x2
jax: 0.10.0
libtpu: 0.0.40
codegen_flags: <defaults>
</compile_context>

<pallas_src>
import numpy as np
import jax
import jax.numpy as jnp
from jax.experimental import pallas as pl
from jax.experimental.pallas import tpu as pltpu


def make_sinusoid_table(n_position: int, d_hid: int) -> jnp.ndarray:
    """Deterministic sinusoid position encoding table, identical math to the module."""
    pos = np.arange(n_position, dtype=np.float64)[:, None]            # (P, 1)
    hid = np.arange(d_hid, dtype=np.int64)[None, :]                    # (1, D)
    angle = pos / np.power(10000.0, 2 * (hid // 2) / d_hid)            # (P, D)
    table = np.empty((n_position, d_hid), dtype=np.float64)
    table[:, 0::2] = np.sin(angle[:, 0::2])
    table[:, 1::2] = np.cos(angle[:, 1::2])
    return jnp.asarray(table, dtype=jnp.float32)                       # (P, D) float32


def _add_pos_kernel(x_ref, pos_ref, o_ref):
    # x_ref: (TB, S*D) batch tile; pos_ref: (1, S*D) resident table slice.
    # Pure VPU broadcast-add along sublanes; the kernel is HBM-bound, compute is free.
    o_ref[...] = x_ref[...] + pos_ref[...]


def _choose_batch_tile(B: int, SD: int) -> int:
    """Pick the batch-tile size (rows of the flattened (B, S*D) array)."""
    bytes_per_row = SD * 4  # f32
    total_bytes = B * bytes_per_row

    # Small inputs: single grid step (one DMA in, one add, one DMA out) is the
    # floor; the pipeline machinery of extra steps is pure overhead here.
    if total_bytes <= 2 * 1024 * 1024:
        return B

    # Large inputs: big tiles amortize the ~0.35 us per-step overhead
    # (measured mem-bound f32 add: 128-row tile -> 29% of HBM roofline,
    #  512 -> 85%, 1024/2048 -> ~86%).
    # Cap so the double-buffered x + out tiles fit the most conservative
    # default scoped-VMEM budget (v5e: 16 MiB; v6e/v7x: 32 MiB):
    #   2 bufs * (x tile + out tile) = 4 * tb * SD * 4 B  <=  ~12 MiB
    #   ->  tb * SD * 4 B  <=  3 MiB.
    max_tile_bytes = 3 * 1024 * 1024
    max_tb = max(8, (max_tile_bytes // bytes_per_row) // 8 * 8)

    # Keep >= 2 grid steps so v7x's two TensorCores can split the "parallel"
    # batch axis (a grid of 1 would leave half the chip idle there); on
    # v5e/v6e (1 TC) two big steps are still ~roofline.
    half = -(-B // 2)            # cdiv(B, 2)
    half = -(-half // 8) * 8     # round up to a sublane multiple of 8

    tb = min(max_tb, half)
    if tb >= B:
        return B                 # full extent satisfies the tiling rule
    return tb


def positional_encoding_forward(x: jnp.ndarray, pos_table: jnp.ndarray,
                                *, donate_x: bool = False) -> jnp.ndarray:
    """x: (B, S, D) float32; pos_table: (P, D) with P >= S. Returns x + pos_table[:S]."""
    B, S, D = x.shape
    SD = S * D  # 12 * 32 = 384, a multiple of 128 -> fully packed lanes

    # Lane-dense flattening: (B, S, D) -> (B, S*D); pos -> (1, S*D).
    x_flat = x.reshape(B, SD)
    pos_flat = pos_table[:S, :].reshape(1, SD)

    tb = _choose_batch_tile(B, SD)
    grid = (pl.cdiv(B, tb),)

    out_flat = pl.pallas_call(
        _add_pos_kernel,
        out_shape=jax.ShapeDtypeStruct((B, SD), x.dtype),
        grid_spec=pl.GridSpec(
            grid=grid,
            in_specs=[
                # x tile: Pallas pads/masks any partial last block; elementwise
                # add is insensitive to the padding contents, so this is safe
                # when tb does not divide B.
                pl.BlockSpec((tb, SD), lambda b: (b, 0)),
                # Resident pos table: constant index map -> DMA'd once; single
                # buffer since the block never changes.
                pl.BlockSpec((1, SD), lambda b: (0, 0),
                             pipeline_mode=pl.Buffered(1)),
            ],
            out_specs=pl.BlockSpec((tb, SD), lambda b: (b, 0)),
        ),
        compiler_params=pltpu.CompilerParams(
            dimension_semantics=("parallel",),
            # Tiles are sized to fit every generation's default scoped-VMEM
            # limit (incl. v5e's 16 MiB), so no vmem_limit_bytes bump needed.
        ),
        # Alias x -> out only if the caller can donate x (avoids the separate
        # output allocation inside a larger jit'ed step).
        input_output_aliases={0: 0} if donate_x else {},
    )(x_flat, pos_flat)

    return out_flat.reshape(B, S, D)


if __name__ == "__main__":
    key = jax.random.PRNGKey(0)
    B, S, D = 256, 12, 32          # matches the spec: x = torch.rand(256, 12, 32)
    n_position = 100

    x = jax.random.uniform(key, (B, S, D), dtype=jnp.float32)
    pos_table = make_sinusoid_table(n_position, D)

    out = positional_encoding_forward(x, pos_table)
    out = jax.block_until_ready(out)

    # reference check in plain JAX
    ref = x + pos_table[:S][None, :, :]
    assert out.shape == (B, S, D)
    np.testing.assert_allclose(np.asarray(out), np.asarray(ref), rtol=1e-6, atol=1e-6)

    print("KERNEL_OK")
</pallas_src>

<mosaic_0001>
module attributes {stable_mosaic.version = 11 : i64} {
  func.func @_add_pos_kernel(%arg0: i32, %arg1: memref<256x384xf32, #tpu.memory_space<vmem>>, %arg2: memref<1x384xf32, #tpu.memory_space<vmem>>, %arg3: memref<256x384xf32, #tpu.memory_space<vmem>>) attributes {dimension_semantics = [#tpu.dimension_semantics<parallel>], iteration_bounds = array<i64: 1>, scalar_prefetch = 0 : i64, scratch_operands = 0 : i64, tpu.core_type = #tpu.core_type<tc>, window_params = [{transform_indices = @transform_0, window_bounds = array<i64: 256, 384>}, {pipeline_mode = #tpu.pipeline_mode<synchronous>, transform_indices = @transform_1, window_bounds = array<i64: 1, 384>}, {transform_indices = @transform_2, window_bounds = array<i64: 256, 384>}]} {
    %c0 = arith.constant 0 : index
    %c0_0 = arith.constant 0 : index
    %0 = vector.load %arg1[%c0, %c0_0] : memref<256x384xf32, #tpu.memory_space<vmem>>, vector<256x384xf32>
    %c0_1 = arith.constant 0 : index
    %c0_2 = arith.constant 0 : index
    %1 = vector.load %arg2[%c0_1, %c0_2] : memref<1x384xf32, #tpu.memory_space<vmem>>, vector<1x384xf32>
    %2 = vector.broadcast %1 : vector<1x384xf32> to vector<256x384xf32>
    %3 = arith.addf %0, %2 : vector<256x384xf32>
    %c0_3 = arith.constant 0 : index
    %c0_4 = arith.constant 0 : index
    %4 = vector.load %arg3[%c0_3, %c0_4] : memref<256x384xf32, #tpu.memory_space<vmem>>, vector<256x384xf32>
    tpu.vector_store %arg3[%c0_3, %c0_4], %3 {strides = array<i32>} : memref<256x384xf32, #tpu.memory_space<vmem>>, vector<256x384xf32>,
    return
  }
  func.func @transform_0(%arg0: i32) -> (i32, i32) {
    %c0_i32 = arith.constant 0 : i32
    %c0_i32_0 = arith.constant 0 : i32
    return %arg0, %c0_i32 : i32, i32
  }
  func.func @transform_1(%arg0: i32) -> (i32, i32) {
    %c0_i32 = arith.constant 0 : i32
    %c0_i32_0 = arith.constant 0 : i32
    %c0_i32_1 = arith.constant 0 : i32
    return %c0_i32, %c0_i32_0 : i32, i32
  }
  func.func @transform_2(%arg0: i32) -> (i32, i32) {
    %c0_i32 = arith.constant 0 : i32
    %c0_i32_0 = arith.constant 0 : i32
    return %arg0, %c0_i32 : i32, i32
  }
}

</mosaic_0001>

<llo_original>
// kernel: tpu_custom_call.1
$region0: #{tpu_custom_call.1}
  #allocation0 [shape = 'u32[]', space=smem, size = 0x4, offset = 0x4, fixed_abs, tag = 'smem constant byte address 0x4 - core index']
  #allocation1 [shape = 'u32[72,128]{1,0:T(1,128)}', space=vmem, size = 0x9000, scoped, tag = 'internal scratch']
  %s0 = inlined_call_operand.hbm [shape: f32[256,384], index: 0, kind: input, shape index: {}]
  %s1 = inlined_call_operand.hbm [shape: f32[1,384], index: 1, kind: input, shape index: {}]
  %s2 = inlined_call_operand.hbm [shape: f32[256,384], index: 2, kind: output, shape index: {}]
  %s3 = sld [smem:[#allocation0]]
  $region26: #{tpu_custom_call.1} parent=0
    _
  %s5 = ssub.s32 1, %s3
  %s6 = scalar_select 0, %s5, %s3
  $region1: #{tpu_custom_call.1} parent=0
    #allocation2 [shape = 'u8[393216]{0}', space=vmem, size = 0x60000, scoped, tag = 'input window, operand 0, single buffered']
    #allocation3 [shape = 's32[1]{0}', space=sflag, size = 0x4, scoped, tag = 'scoped memory for tpu_custom_call.1']
    #allocation4 [shape = 's32[1]{0}', space=sflag, size = 0x4, scoped, tag = 'scoped memory for tpu_custom_call.1']
    #allocation5 [shape = 'u8[1536]{0}', space=vmem, size = 0x800, scoped, tag = 'input window, operand 1, single buffered']
    #allocation6 [shape = 's32[1]{0}', space=sflag, size = 0x4, scoped, tag = 'scoped memory for tpu_custom_call.1']
    #allocation7 [shape = 'u8[393216]{0}', space=vmem, size = 0x60000, scoped, tag = 'output window, operand 0, single buffered']
    %7 = vsyncpa [#allocation3], 0
    %8 = vsyncpa [#allocation6], 0
    %9 = vsyncpa [#allocation4], 0
    // Predicated region
    $region2: #{tpu_custom_call.1} parent=1 // pred_check
      _
    $region3: #{tpu_custom_call.1} parent=1 // pred_check_branch
      %11 = sbr.rel (0) target = $region5
    $region4: #{tpu_custom_call.1} parent=1 // pred_region
      %13 = vsyncadd [#allocation3], 0
      %s14 = sshll.u32 %s0, 4
      %s15 = int_to_ptr.hbm [resolvable:$true] %s14
      %s16 = sshll.u32 [#allocation2], 4
      %s17 = int_to_ptr.vmem [resolvable:$true] %s16
      %22 = dma.hbm_to_vmem [thread:$0]  %s15, 12288, %s17, [#allocation3], 384, 384, 24
    $region5: #{tpu_custom_call.1} parent=1 // pred_fallthru
      _
    // Predicated region
    $region6: #{tpu_custom_call.1} parent=1 // pred_check
      _
    $region7: #{tpu_custom_call.1} parent=1 // pred_check_branch
      %24 = sbr.rel (0) target = $region9
    $region8: #{tpu_custom_call.1} parent=1 // pred_region
      %26 = vsyncadd [#allocation6], 0
      %s28 = sshll.u32 %s1, 4
      %s29 = int_to_ptr.hbm [resolvable:$true] %s28
      %s30 = sshll.u32 [#allocation5], 4
      %s31 = int_to_ptr.vmem [resolvable:$true] %s30
      %33 = dma.hbm_to_vmem [thread:$0]  %s29, 48, %s31, [#allocation6]
    $region9: #{tpu_custom_call.1} parent=1 // pred_fallthru
      _
    // Predicated region
    $region10: #{tpu_custom_call.1} parent=1 // pred_check
      _
    $region11: #{tpu_custom_call.1} parent=1 // pred_check_branch
      %35 = sbr.rel (0) target = $region13
    $region12: #{tpu_custom_call.1} parent=1 // pred_region
      %37 = dma.done [#allocation3], 12288
    $region13: #{tpu_custom_call.1} parent=1 // pred_fallthru
      _
    // Predicated region
    $region14: #{tpu_custom_call.1} parent=1 // pred_check
      _
    $region15: #{tpu_custom_call.1} parent=1 // pred_check_branch
      %39 = sbr.rel (0) target = $region17
    $region16: #{tpu_custom_call.1} parent=1 // pred_region
      %41 = dma.done [#allocation6], 48
    $region17: #{tpu_custom_call.1} parent=1 // pred_fallthru
      _
    %v42 = vld [vmem:[#allocation2] sm:$0xff]
    %v43 = vld [vmem:[#allocation2 + $0x8] sm:$0xff]
    %v44 = vld [vmem:[#allocation2 + $0x10] sm:$0xff]
    %v45 = vld [vmem:[#allocation2 + $0x18] sm:$0xff]
    %v46 = vld [vmem:[#allocation2 + $0x20] sm:$0xff]
    %v47 = vld [vmem:[#allocation2 + $0x28] sm:$0xff]
    %v48 = vld [vmem:[#allocation2 + $0x30] sm:$0xff]
    %v49 = vld [vmem:[#allocation2 + $0x38] sm:$0xff]
    %v50 = vld [vmem:[#allocation2 + $0x40] sm:$0xff]
    %v51 = vld [vmem:[#allocation2 + $0x48] sm:$0xff]
    %v52 = vld [vmem:[#allocation2 + $0x50] sm:$0xff]
    %v53 = vld [vmem:[#allocation2 + $0x58] sm:$0xff]
    %v54 = vld [vmem:[#allocation2 + $0x60] sm:$0xff]
    %v55 = vld [vmem:[#allocation2 + $0x68] sm:$0xff]
    %v56 = vld [vmem:[#allocation2 + $0x70] sm:$0xff]
    %v57 = vld [vmem:[#allocation2 + $0x78] sm:$0xff]
    %v58 = vld [vmem:[#allocation2 + $0x80] sm:$0xff]
    %v59 = vld [vmem:[#allocation2 + $0x88] sm:$0xff]
    %v60 = vld [vmem:[#allocation2 + $0x90] sm:$0xff]
    %v61 = vld [vmem:[#allocation2 + $0x98] sm:$0xff]
    %v62 = vld [vmem:[#allocation2 + $0xa0] sm:$0xff]
    %v63 = vld [vmem:[#allocation2 + $0xa8] sm:$0xff]
    %v64 = vld [vmem:[#allocation2 + $0xb0] sm:$0xff]
    %v65 = vld [vmem:[#allocation2 + $0xb8] sm:$0xff]
    %v66 = vld [vmem:[#allocation2 + $0xc0] sm:$0xff]
    %v67 = vld [vmem:[#allocation2 + $0xc8] sm:$0xff]
    %v68 = vld [vmem:[#allocation2 + $0xd0] sm:$0xff]
    %v69 = vld [vmem:[#allocation2 + $0xd8] sm:$0xff]
    %v70 = vld [vmem:[#allocation2 + $0xe0] sm:$0xff]
    %v71 = vld [vmem:[#allocation2 + $0xe8] sm:$0xff]
    %v72 = vld [vmem:[#allocation2 + $0xf0] sm:$0xff]
    %v73 = vld [vmem:[#allocation2 + $0xf8] sm:$0xff]
    %v74 = vld [vmem:[#allocation2 + $0x100] sm:$0xff]
    %v75 = vld [vmem:[#allocation2 + $0x108] sm:$0xff]
    %v76 = vld [vmem:[#allocation2 + $0x110] sm:$0xff]
    %v77 = vld [vmem:[#allocation2 + $0x118] sm:$0xff]
    %v78 = vld [vmem:[#allocation2 + $0x120] sm:$0xff]
    %v79 = vld [vmem:[#allocation2 + $0x128] sm:$0xff]
    %v80 = vld [vmem:[#allocation2 + $0x130] sm:$0xff]
    %v81 = vld [vmem:[#allocation2 + $0x138] sm:$0xff]
    %v82 = vld [vmem:[#allocation2 + $0x140] sm:$0xff]
    %v83 = vld [vmem:[#allocation2 + $0x148] sm:$0xff]
    %v84 = vld [vmem:[#allocation2 + $0x150] sm:$0xff]
    %v85 = vld [vmem:[#allocation2 + $0x158] sm:$0xff]
    %v86 = vld [vmem:[#allocation2 + $0x160] sm:$0xff]
    %v87 = vld [vmem:[#allocation2 + $0x168] sm:$0xff]
    %v88 = vld [vmem:[#allocation2 + $0x170] sm:$0xff]
    %v89 = vld [vmem:[#allocation2 + $0x178] sm:$0xff]
    %v90 = vld [vmem:[#allocation2 + $0x180] sm:$0xff]
    %v91 = vld [vmem:[#allocation2 + $0x188] sm:$0xff]
    %v92 = vld [vmem:[#allocation2 + $0x190] sm:$0xff]
    %v93 = vld [vmem:[#allocation2 + $0x198] sm:$0xff]
    %v94 = vld [vmem:[#allocation2 + $0x1a0] sm:$0xff]
    %v95 = vld [vmem:[#allocation2 + $0x1a8] sm:$0xff]
    %v96 = vld [vmem:[#allocation2 + $0x1b0] sm:$0xff]
    %v97 = vld [vmem:[#allocation2 + $0x1b8] sm:$0xff]
    %v98 = vld [vmem:[#allocation2 + $0x1c0] sm:$0xff]
    %v99 = vld [vmem:[#allocation2 + $0x1c8] sm:$0xff]
    %v100 = vld [vmem:[#allocation2 + $0x1d0] sm:$0xff]
    %v101 = vld [vmem:[#allocation2 + $0x1d8] sm:$0xff]
    %v102 = vld [vmem:[#allocation2 + $0x1e0] sm:$0xff]
    %v103 = vld [vmem:[#allocation2 + $0x1e8] sm:$0xff]
    %v104 = vld [vmem:[#allocation2 + $0x1f0] sm:$0xff]
    %v105 = vld [vmem:[#allocation2 + $0x1f8] sm:$0xff]
    %v106 = vld [vmem:[#allocation2 + $0x200] sm:$0xff]
    %v107 = vld [vmem:[#allocation2 + $0x208] sm:$0xff]
    %v108 = vld [vmem:[#allocation2 + $0x210] sm:$0xff]
    %v109 = vld [vmem:[#allocation2 + $0x218] sm:$0xff]
    %v110 = vld [vmem:[#allocation2 + $0x220] sm:$0xff]
    %v111 = vld [vmem:[#allocation2 + $0x228] sm:$0xff]
    %v112 = vld [vmem:[#allocation2 + $0x230] sm:$0xff]
    %v113 = vld [vmem:[#allocation2 + $0x238] sm:$0xff]
    %v114 = vld [vmem:[#allocation2 + $0x240] sm:$0xff]
    %v115 = vld [vmem:[#allocation2 + $0x248] sm:$0xff]
    %v116 = vld [vmem:[#allocation2 + $0x250] sm:$0xff]
    %v117 = vld [vmem:[#allocation2 + $0x258] sm:$0xff]
    %v118 = vld [vmem:[#allocation2 + $0x260] sm:$0xff]
    %v119 = vld [vmem:[#allocation2 + $0x268] sm:$0xff]
    %v120 = vld [vmem:[#allocation2 + $0x270] sm:$0xff]
    %v121 = vld [vmem:[#allocation2 + $0x278] sm:$0xff]
    %v122 = vld [vmem:[#allocation2 + $0x280] sm:$0xff]
    %v123 = vld [vmem:[#allocation2 + $0x288] sm:$0xff]
    %v124 = vld [vmem:[#allocation2 + $0x290] sm:$0xff]
    %v125 = vld [vmem:[#allocation2 + $0x298] sm:$0xff]
    %v126 = vld [vmem:[#allocation2 + $0x2a0] sm:$0xff]
    %v127 = vld [vmem:[#allocation2 + $0x2a8] sm:$0xff]
    %v128 = vld [vmem:[#allocation2 + $0x2b0] sm:$0xff]
    %v129 = vld [vmem:[#allocation2 + $0x2b8] sm:$0xff]
    %v130 = vld [vmem:[#allocation2 + $0x2c0] sm:$0xff]
    %v131 = vld [vmem:[#allocation2 + $0x2c8] sm:$0xff]
    %v132 = vld [vmem:[#allocation2 + $0x2d0] sm:$0xff]
    %v133 = vld [vmem:[#allocation2 + $0x2d8] sm:$0xff]
    %v134 = vld [vmem:[#allocation2 + $0x2e0] sm:$0xff]
    %v135 = vld [vmem:[#allocation2 + $0x2e8] sm:$0xff]
    %v136 = vld [vmem:[#allocation2 + $0x2f0] sm:$0xff]
    %v137 = vld [vmem:[#allocation2 + $0x2f8] sm:$0xff]
    %v138 = vld [vmem:[#allocation5] sm:$0x7]
    %v140 = vperm.slane %v138, 0
    %v141 = vperm.slane %v138, 1
    %v142 = vperm.slane %v138, 2
    %v146 = vadd.f32 %v42, %v140
    %v147 = vadd.f32 %v43, %v141
    %v148 = vadd.f32 %v44, %v142
    %v149 = vadd.f32 %v45, %v140
    %v150 = vadd.f32 %v46, %v141
    %v151 = vadd.f32 %v47, %v142
    %v152 = vadd.f32 %v48, %v140
    %v153 = vadd.f32 %v49, %v141
    %v154 = vadd.f32 %v50, %v142
    %v155 = vadd.f32 %v51, %v140
    %v156 = vadd.f32 %v52, %v141
    %v157 = vadd.f32 %v53, %v142
    %v158 = vadd.f32 %v54, %v140
    %v159 = vadd.f32 %v55, %v141
    %v160 = vadd.f32 %v56, %v142
    %v161 = vadd.f32 %v57, %v140
    %v162 = vadd.f32 %v58, %v141
    %v163 = vadd.f32 %v59, %v142
    %v164 = vadd.f32 %v60, %v140
    %v165 = vadd.f32 %v61, %v141
    %v166 = vadd.f32 %v62, %v142
    %v167 = vadd.f32 %v63, %v140
    %v168 = vadd.f32 %v64, %v141
    %v169 = vadd.f32 %v65, %v142
    %v170 = vadd.f32 %v66, %v140
    %v171 = vadd.f32 %v67, %v141
    %v172 = vadd.f32 %v68, %v142
    %v173 = vadd.f32 %v69, %v140
    %v174 = vadd.f32 %v70, %v141
    %v175 = vadd.f32 %v71, %v142
    %v176 = vadd.f32 %v72, %v140
    %v177 = vadd.f32 %v73, %v141
    %v178 = vadd.f32 %v74, %v142
    %v179 = vadd.f32 %v75, %v140
    %v180 = vadd.f32 %v76, %v141
    %v181 = vadd.f32 %v77, %v142
    %v182 = vadd.f32 %v78, %v140
    %v183 = vadd.f32 %v79, %v141
    %v184 = vadd.f32 %v80, %v142
    %v185 = vadd.f32 %v81, %v140
    %v186 = vadd.f32 %v82, %v141
    %v187 = vadd.f32 %v83, %v142
    %v188 = vadd.f32 %v84, %v140
    %v189 = vadd.f32 %v85, %v141
    %v190 = vadd.f32 %v86, %v142
    %v191 = vadd.f32 %v87, %v140
    %v192 = vadd.f32 %v88, %v141
    %v193 = vadd.f32 %v89, %v142
    %v194 = vadd.f32 %v90, %v140
    %v195 = vadd.f32 %v91, %v141
    %v196 = vadd.f32 %v92, %v142
    %v197 = vadd.f32 %v93, %v140
    %v198 = vadd.f32 %v94, %v141
    %v199 = vadd.f32 %v95, %v142
    %v200 = vadd.f32 %v96, %v140
    %v201 = vadd.f32 %v97, %v141
    %v202 = vadd.f32 %v98, %v142
    %v203 = vadd.f32 %v99, %v140
    %v204 = vadd.f32 %v100, %v141
    %v205 = vadd.f32 %v101, %v142
    %v206 = vadd.f32 %v102, %v140
    %v207 = vadd.f32 %v103, %v141
    %v208 = vadd.f32 %v104, %v142
    %v209 = vadd.f32 %v105, %v140
    %v210 = vadd.f32 %v106, %v141
    %v211 = vadd.f32 %v107, %v142
    %v212 = vadd.f32 %v108, %v140
    %v213 = vadd.f32 %v109, %v141
    %v214 = vadd.f32 %v110, %v142
    %v215 = vadd.f32 %v111, %v140
    %v216 = vadd.f32 %v112, %v141
    %v217 = vadd.f32 %v113, %v142
    %v218 = vadd.f32 %v114, %v140
    %v219 = vadd.f32 %v115, %v141
    %v220 = vadd.f32 %v116, %v142
    %v221 = vadd.f32 %v117, %v140
    %v222 = vadd.f32 %v118, %v141
    %v223 = vadd.f32 %v119, %v142
    %v224 = vadd.f32 %v120, %v140
    %v225 = vadd.f32 %v121, %v141
    %v226 = vadd.f32 %v122, %v142
    %v227 = vadd.f32 %v123, %v140
    %v228 = vadd.f32 %v124, %v141
    %v229 = vadd.f32 %v125, %v142
    %v230 = vadd.f32 %v126, %v140
    %v231 = vadd.f32 %v127, %v141
    %v232 = vadd.f32 %v128, %v142
    %v233 = vadd.f32 %v129, %v140
    %v234 = vadd.f32 %v130, %v141
    %v235 = vadd.f32 %v131, %v142
    %v236 = vadd.f32 %v132, %v140
    %v237 = vadd.f32 %v133, %v141
    %v238 = vadd.f32 %v134, %v142
    %v239 = vadd.f32 %v135, %v140
    %v240 = vadd.f32 %v136, %v141
    %v241 = vadd.f32 %v137, %v142
    %242 = vst [vmem:[#allocation7] sm:$0xff] %v146
    %243 = vst [vmem:[#allocation7 + $0x8] sm:$0xff] %v147
    %244 = vst [vmem:[#allocation7 + $0x10] sm:$0xff] %v148
    %245 = vst [vmem:[#allocation7 + $0x18] sm:$0xff] %v149
    %246 = vst [vmem:[#allocation7 + $0x20] sm:$0xff] %v150
    %247 = vst [vmem:[#allocation7 + $0x28] sm:$0xff] %v151
    %248 = vst [vmem:[#allocation7 + $0x30] sm:$0xff] %v152
    %249 = vst [vmem:[#allocation7 + $0x38] sm:$0xff] %v153
    %250 = vst [vmem:[#allocation7 + $0x40] sm:$0xff] %v154
    %251 = vst [vmem:[#allocation7 + $0x48] sm:$0xff] %v155
    %252 = vst [vmem:[#allocation7 + $0x50] sm:$0xff] %v156
    %253 = vst [vmem:[#allocation7 + $0x58] sm:$0xff] %v157
    %254 = vst [vmem:[#allocation7 + $0x60] sm:$0xff] %v158
    %255 = vst [vmem:[#allocation7 + $0x68] sm:$0xff] %v159
    %256 = vst [vmem:[#allocation7 + $0x70] sm:$0xff] %v160
    %257 = vst [vmem:[#allocation7 + $0x78] sm:$0xff] %v161
    %258 = vst [vmem:[#allocation7 + $0x80] sm:$0xff] %v162
    %259 = vst [vmem:[#allocation7 + $0x88] sm:$0xff] %v163
    %260 = vst [vmem:[#allocation7 + $0x90] sm:$0xff] %v164
    %261 = vst [vmem:[#allocation7 + $0x98] sm:$0xff] %v165
    %262 = vst [vmem:[#allocation7 + $0xa0] sm:$0xff] %v166
    %263 = vst [vmem:[#allocation7 + $0xa8] sm:$0xff] %v167
    %264 = vst [vmem:[#allocation7 + $0xb0] sm:$0xff] %v168
    %265 = vst [vmem:[#allocation7 + $0xb8] sm:$0xff] %v169
    %266 = vst [vmem:[#allocation7 + $0xc0] sm:$0xff] %v170
    %267 = vst [vmem:[#allocation7 + $0xc8] sm:$0xff] %v171
    %268 = vst [vmem:[#allocation7 + $0xd0] sm:$0xff] %v172
    %269 = vst [vmem:[#allocation7 + $0xd8] sm:$0xff] %v173
    %270 = vst [vmem:[#allocation7 + $0xe0] sm:$0xff] %v174
    %271 = vst [vmem:[#allocation7 + $0xe8] sm:$0xff] %v175
    %272 = vst [vmem:[#allocation7 + $0xf0] sm:$0xff] %v176
    %273 = vst [vmem:[#allocation7 + $0xf8] sm:$0xff] %v177
    %274 = vst [vmem:[#allocation7 + $0x100] sm:$0xff] %v178
    %275 = vst [vmem:[#allocation7 + $0x108] sm:$0xff] %v179
    %276 = vst [vmem:[#allocation7 + $0x110] sm:$0xff] %v180
    %277 = vst [vmem:[#allocation7 + $0x118] sm:$0xff] %v181
    %278 = vst [vmem:[#allocation7 + $0x120] sm:$0xff] %v182
    %279 = vst [vmem:[#allocation7 + $0x128] sm:$0xff] %v183
    %280 = vst [vmem:[#allocation7 + $0x130] sm:$0xff] %v184
    %281 = vst [vmem:[#allocation7 + $0x138] sm:$0xff] %v185
    %282 = vst [vmem:[#allocation7 + $0x140] sm:$0xff] %v186
    %283 = vst [vmem:[#allocation7 + $0x148] sm:$0xff] %v187
    %284 = vst [vmem:[#allocation7 + $0x150] sm:$0xff] %v188
    %285 = vst [vmem:[#allocation7 + $0x158] sm:$0xff] %v189
    %286 = vst [vmem:[#allocation7 + $0x160] sm:$0xff] %v190
    %287 = vst [vmem:[#allocation7 + $0x168] sm:$0xff] %v191
    %288 = vst [vmem:[#allocation7 + $0x170] sm:$0xff] %v192
    %289 = vst [vmem:[#allocation7 + $0x178] sm:$0xff] %v193
    %290 = vst [vmem:[#allocation7 + $0x180] sm:$0xff] %v194
    %291 = vst [vmem:[#allocation7 + $0x188] sm:$0xff] %v195
    %292 = vst [vmem:[#allocation7 + $0x190] sm:$0xff] %v196
    %293 = vst [vmem:[#allocation7 + $0x198] sm:$0xff] %v197
    %294 = vst [vmem:[#allocation7 + $0x1a0] sm:$0xff] %v198
    %295 = vst [vmem:[#allocation7 + $0x1a8] sm:$0xff] %v199
    %296 = vst [vmem:[#allocation7 + $0x1b0] sm:$0xff] %v200
    %297 = vst [vmem:[#allocation7 + $0x1b8] sm:$0xff] %v201
    %298 = vst [vmem:[#allocation7 + $0x1c0] sm:$0xff] %v202
    %299 = vst [vmem:[#allocation7 + $0x1c8] sm:$0xff] %v203
    %300 = vst [vmem:[#allocation7 + $0x1d0] sm:$0xff] %v204
    %301 = vst [vmem:[#allocation7 + $0x1d8] sm:$0xff] %v205
    %302 = vst [vmem:[#allocation7 + $0x1e0] sm:$0xff] %v206
    %303 = vst [vmem:[#allocation7 + $0x1e8] sm:$0xff] %v207
    %304 = vst [vmem:[#allocation7 + $0x1f0] sm:$0xff] %v208
    %305 = vst [vmem:[#allocation7 + $0x1f8] sm:$0xff] %v209
    %306 = vst [vmem:[#allocation7 + $0x200] sm:$0xff] %v210
    %307 = vst [vmem:[#allocation7 + $0x208] sm:$0xff] %v211
    %308 = vst [vmem:[#allocation7 + $0x210] sm:$0xff] %v212
    %309 = vst [vmem:[#allocation7 + $0x218] sm:$0xff] %v213
    %310 = vst [vmem:[#allocation7 + $0x220] sm:$0xff] %v214
    %311 = vst [vmem:[#allocation7 + $0x228] sm:$0xff] %v215
    %312 = vst [vmem:[#allocation7 + $0x230] sm:$0xff] %v216
    %313 = vst [vmem:[#allocation7 + $0x238] sm:$0xff] %v217
    %314 = vst [vmem:[#allocation7 + $0x240] sm:$0xff] %v218
    %315 = vst [vmem:[#allocation7 + $0x248] sm:$0xff] %v219
    %316 = vst [vmem:[#allocation7 + $0x250] sm:$0xff] %v220
    %317 = vst [vmem:[#allocation7 + $0x258] sm:$0xff] %v221
    %318 = vst [vmem:[#allocation7 + $0x260] sm:$0xff] %v222
    %319 = vst [vmem:[#allocation7 + $0x268] sm:$0xff] %v223
    %320 = vst [vmem:[#allocation7 + $0x270] sm:$0xff] %v224
    %321 = vst [vmem:[#allocation7 + $0x278] sm:$0xff] %v225
    %322 = vst [vmem:[#allocation7 + $0x280] sm:$0xff] %v226
    %323 = vst [vmem:[#allocation7 + $0x288] sm:$0xff] %v227
    %324 = vst [vmem:[#allocation7 + $0x290] sm:$0xff] %v228
    %325 = vst [vmem:[#allocation7 + $0x298] sm:$0xff] %v229
    %326 = vst [vmem:[#allocation7 + $0x2a0] sm:$0xff] %v230
    %327 = vst [vmem:[#allocation7 + $0x2a8] sm:$0xff] %v231
    %328 = vst [vmem:[#allocation7 + $0x2b0] sm:$0xff] %v232
    %329 = vst [vmem:[#allocation7 + $0x2b8] sm:$0xff] %v233
    %330 = vst [vmem:[#allocation7 + $0x2c0] sm:$0xff] %v234
    %331 = vst [vmem:[#allocation7 + $0x2c8] sm:$0xff] %v235
    %332 = vst [vmem:[#allocation7 + $0x2d0] sm:$0xff] %v236
    %333 = vst [vmem:[#allocation7 + $0x2d8] sm:$0xff] %v237
    %334 = vst [vmem:[#allocation7 + $0x2e0] sm:$0xff] %v238
    %335 = vst [vmem:[#allocation7 + $0x2e8] sm:$0xff] %v239
    %336 = vst [vmem:[#allocation7 + $0x2f0] sm:$0xff] %v240
    %337 = vst [vmem:[#allocation7 + $0x2f8] sm:$0xff] %v241
    // Predicated region
    $region18: #{tpu_custom_call.1} parent=1 // pred_check
      _
    $region19: #{tpu_custom_call.1} parent=1 // pred_check_branch
      %339 = sbr.rel (0) target = $region21
    $region20: #{tpu_custom_call.1} parent=1 // pred_region
      %341 = vsyncadd [#allocation4], 0
      %s342 = sshll.u32 [#allocation7], 4
      %s343 = int_to_ptr.vmem [resolvable:$true] %s342
      %s344 = sshll.u32 %s2, 4
      %s345 = int_to_ptr.hbm [resolvable:$true] %s344
      %350 = dma.vmem_to_hbm [thread:$0]  %s343, 12288, %s345, [#allocation4], 384, 384, 24
    $region21: #{tpu_custom_call.1} parent=1 // pred_fallthru
      _
    // Predicated region
    $region22: #{tpu_custom_call.1} parent=1 // pred_check
      _
    $region23: #{tpu_custom_call.1} parent=1 // pred_check_branch
      %352 = sbr.rel (0) target = $region25
    $region24: #{tpu_custom_call.1} parent=1 // pred_region
      %354 = dma.done [#allocation4], 12288
    $region25: #{tpu_custom_call.1} parent=1 // pred_fallthru
      _
    %355 = vsyncpa [#allocation3], 1
    %356 = vsyncpa [#allocation6], 1
    %357 = vsyncpa [#allocation4], 1

</llo_original>
